<compile_context>
chip_gen: v5e
topology: v5e:2x2
jax: 0.10.0
libtpu: 0.0.40
codegen_flags: <defaults>
</compile_context>

<pallas_src>
import jax
import jax.numpy as jnp
from jax.experimental import pallas as pl
from jax.experimental.pallas import tpu as pltpu


# ----------------------------------------------------------------------------
# Kernels
# ----------------------------------------------------------------------------
def _mlp_kernel(x_ref, w1_ref, b1_ref, w2_ref, b2_ref, out_ref):
    """All-weights-resident path: one batch tile per grid step."""
    # fc1: (TB, D)bf16 @ (D, H_pad)bf16 -> f32 accumulation on the MXU.
    h = jnp.dot(x_ref[...], w1_ref[...], preferred_element_type=jnp.float32)
    # bias + ReLU in f32 on the VPU (v5e VPU has no bf16).
    h = jnp.maximum(h + b1_ref[...], 0.0)
    # fc2: deliberate bf16 cast of the activations for the MXU, f32 accumulate.
    o = jnp.dot(h.astype(jnp.bfloat16), w2_ref[...],
                preferred_element_type=jnp.float32)
    out_ref[...] = (o + b2_ref[...]).astype(out_ref.dtype)


def _mlp_kernel_htiled(x_ref, w1_ref, b1_ref, w2_ref, b2_ref, out_ref, acc_ref):
    """Hidden-dim-tiled path: grid = (batch tiles, hidden tiles).

    fc1 is N-tiled and fc2 is K-tiled over the hidden dim; partial fc2 products
    are accumulated in an f32 VMEM scratch and finalized on the last step.
    """
    k = pl.program_id(1)

    @pl.when(k == 0)
    def _init():
        acc_ref[...] = jnp.zeros_like(acc_ref)

    h = jnp.dot(x_ref[...], w1_ref[...], preferred_element_type=jnp.float32)
    h = jnp.maximum(h + b1_ref[...], 0.0)
    acc_ref[...] += jnp.dot(h.astype(jnp.bfloat16), w2_ref[...],
                            preferred_element_type=jnp.float32)

    @pl.when(k == pl.num_programs(1) - 1)
    def _finalize():
        out_ref[...] = (acc_ref[...] + b2_ref[...]).astype(out_ref.dtype)


# ----------------------------------------------------------------------------
# Helpers
# ----------------------------------------------------------------------------
def _round_up(n, m):
    return ((n + m - 1) // m) * m


def _default_block_b():
    # v5e's MXU is 128-wide: 128-row tiles; v6e/v7x are 256-wide: 256-row tiles.
    try:
        kind = jax.devices()[0].device_kind.lower()
    except Exception:
        kind = ""
    return 128 if "v5" in kind else 256


def _vmem_capacity_bytes():
    try:
        return int(pltpu.get_tpu_info().vmem_capacity_bytes)
    except Exception:
        return 64 * 1024 * 1024   # v7x worst case (64 MiB per TensorCore)


def pack_params(w1, b1, w2, b2):
    """Pre-pack the parameters ONCE (outside the per-call hot path).

    Zero-pads the hidden and class dims up to multiples of 128 lanes and casts
    the weights to bf16 (biases stay f32 for the VPU epilogue).

    w1: (input_size, hidden_size)   (transposed vs. PyTorch's (out, in))
    b1: (hidden_size,)
    w2: (hidden_size, num_classes)
    b2: (num_classes,)
    Returns (w1_p, b1_p, w2_p, b2_p).
    """
    D, H = w1.shape
    C = w2.shape[1]
    H_pad = _round_up(H, 128)
    C_pad = _round_up(C, 128)
    bf16, f32 = jnp.bfloat16, jnp.float32
    w1_p = jnp.pad(w1.astype(bf16), ((0, 0), (0, H_pad - H)))
    b1_p = jnp.pad(b1.astype(f32), (0, H_pad - H)).reshape(1, H_pad)
    w2_p = jnp.pad(w2.astype(bf16), ((0, H_pad - H), (0, C_pad - C)))
    b2_p = jnp.pad(b2.astype(f32), (0, C_pad - C)).reshape(1, C_pad)
    return w1_p, b1_p, w2_p, b2_p


_SINGLE_BUFFER_WEIGHTS = True   # flipped off if pl.Buffered(1) is unsupported


def _resident_call(x_p, w1_p, b1_p, w2_p, b2_p, TB, cost, vmem_limit):
    global _SINGLE_BUFFER_WEIGHTS
    B_pad, D = x_p.shape
    H_pad = w1_p.shape[1]
    C_pad = w2_p.shape[1]
    grid = (B_pad // TB,)

    def build(single_buffer_weights):
        # Weights/biases have constant index_maps -> VMEM-resident, not
        # re-fetched per batch tile. Buffered(1) drops their useless 2nd buffer.
        wkw = dict(pipeline_mode=pl.Buffered(1)) if single_buffer_weights else {}
        return pl.pallas_call(
            _mlp_kernel,
            out_shape=jax.ShapeDtypeStruct((B_pad, C_pad), jnp.float32),
            grid_spec=pltpu.PrefetchScalarGridSpec(
                num_scalar_prefetch=0,
                grid=grid,
                in_specs=[
                    # x: batch-tiled, double-buffered by the Pallas pipeline.
                    pl.BlockSpec((TB, D), lambda i: (i, 0)),
                    pl.BlockSpec((D, H_pad), lambda i: (0, 0), **wkw),
                    pl.BlockSpec((1, H_pad), lambda i: (0, 0), **wkw),
                    pl.BlockSpec((H_pad, C_pad), lambda i: (0, 0), **wkw),
                    pl.BlockSpec((1, C_pad), lambda i: (0, 0), **wkw),
                ],
                # Lane-dense output tile: last dim C_pad is a multiple of 128.
                out_specs=pl.BlockSpec((TB, C_pad), lambda i: (i, 0)),
            ),
            compiler_params=pltpu.CompilerParams(
                dimension_semantics=("parallel",),
                vmem_limit_bytes=vmem_limit),
            cost_estimate=cost,
        )

    if _SINGLE_BUFFER_WEIGHTS:
        try:
            return build(True)(x_p, w1_p, b1_p, w2_p, b2_p)
        except Exception:
            # pipeline_mode / Buffered(1) not supported on this jax version.
            _SINGLE_BUFFER_WEIGHTS = False
    return build(False)(x_p, w1_p, b1_p, w2_p, b2_p)


def _htiled_call(x_p, w1_p, b1_p, w2_p, b2_p, TB, TH, cost, vmem_limit):
    B_pad, D = x_p.shape
    H_pad = w1_p.shape[1]
    C_pad = w2_p.shape[1]
    grid = (B_pad // TB, H_pad // TH)
    return pl.pallas_call(
        _mlp_kernel_htiled,
        out_shape=jax.ShapeDtypeStruct((B_pad, C_pad), jnp.float32),
        grid_spec=pltpu.PrefetchScalarGridSpec(
            num_scalar_prefetch=0,
            grid=grid,
            in_specs=[
                pl.BlockSpec((TB, D), lambda i, k: (i, 0)),
                pl.BlockSpec((D, TH), lambda i, k: (0, k)),
                pl.BlockSpec((1, TH), lambda i, k: (0, k)),
                pl.BlockSpec((TH, C_pad), lambda i, k: (k, 0)),
                pl.BlockSpec((1, C_pad), lambda i, k: (0, 0)),
            ],
            out_specs=pl.BlockSpec((TB, C_pad), lambda i, k: (i, 0)),
            scratch_shapes=[pltpu.VMEM((TB, C_pad), jnp.float32)],
        ),
        compiler_params=pltpu.CompilerParams(
            dimension_semantics=("parallel", "arbitrary"),
            vmem_limit_bytes=vmem_limit),
        cost_estimate=cost,
    )(x_p, w1_p, b1_p, w2_p, b2_p)


# ----------------------------------------------------------------------------
# Forward pass
# ----------------------------------------------------------------------------
def mlp_forward(x, w1_p, b1_p, w2_p, b2_p, num_classes, *,
                block_b=None, block_h=None, force_hidden_tiling=False):
    """relu(x @ W1 + b1) @ W2 + b2 with pre-packed (padded, bf16) parameters.

    x : (B, input_size) float32. Returns (B, num_classes) float32.
    """
    B, D = x.shape
    H_pad = w1_p.shape[1]
    C_pad = w2_p.shape[1]
    C = int(num_classes)

    if block_b is None:
        block_b = _default_block_b()

    # Batch tile: multiple of 16 (packed bf16 sublanes). If the whole batch fits
    # one tile but is big enough, split into two tiles so v7x's 2nd TC gets work.
    B16 = _round_up(B, 16)
    TB = min(block_b, B16)
    if TB == B16 and B16 >= 64:
        TB = _round_up(-(-B16 // 2), 16)
    B_pad = _round_up(B16, TB)

    # Single-op pad of the bf16-cast activations; D is left un-padded on purpose.
    x_p = x.astype(jnp.bfloat16)
    if B_pad != B:
        x_p = jnp.pad(x_p, ((0, B_pad - B), (0, 0)))

    cap = _vmem_capacity_bytes()
    budget = int(cap * 0.7)

    w_bytes = (w1_p.size + w2_p.size) * 2 + (b1_p.size + b2_p.size) * 4
    io_bytes = 2 * (TB * D * 2) + 2 * (TB * C_pad * 4)     # double-buffered x/out
    act_bytes = TB * H_pad * 6                              # f32 + bf16 hidden acts
    resident_need = 2 * w_bytes + io_bytes + act_bytes      # conservative (2x weights)

    flops = 2 * B_pad * (D * H_pad + H_pad * C_pad)
    bytes_accessed = x_p.size * 2 + w_bytes + B_pad * C_pad * 4
    cost = pl.CostEstimate(flops=flops, transcendentals=0,
                           bytes_accessed=bytes_accessed)

    if (not force_hidden_tiling) and resident_need <= budget:
        vmem_limit = int(min(cap, max(resident_need + (4 << 20), 16 << 20)))
        out_p = _resident_call(x_p, w1_p, b1_p, w2_p, b2_p, TB, cost, vmem_limit)
    else:
        # Weights do not fit VMEM: tile the hidden dim (fc1 N-tiles / fc2 K-tiles).
        if block_h is not None:
            TH = int(block_h)
        else:
            TH = 128
            for cand in (1024, 512, 256):
                step_bytes = 2 * (D * cand * 2 + cand * 4 + cand * C_pad * 2)
                if H_pad % cand == 0 and step_bytes <= budget // 2:
                    TH = cand
                    break
        assert H_pad % TH == 0 and TH % 128 == 0, (H_pad, TH)
        ht_need = (2 * (TB * D * 2 + D * TH * 2 + TH * 4 + TH * C_pad * 2
                        + C_pad * 4 + TB * C_pad * 4)
                   + TB * C_pad * 4 + TB * TH * 6)
        vmem_limit = int(min(cap, max(ht_need + (4 << 20), 16 << 20)))
        out_p = _htiled_call(x_p, w1_p, b1_p, w2_p, b2_p, TB, TH, cost, vmem_limit)

    # Cheap un-padding: slice only the dims that were actually padded.
    if B_pad == B and C_pad == C:
        return out_p
    if B_pad == B:
        return out_p[:, :C]
    if C_pad == C:
        return out_p[:B]
    return out_p[:B, :C]


def neural_network_classifier(x, w1, b1, w2, b2, **kwargs):
    """Drop-in forward that packs the params per call.

    Prefer pack_params(...) once + mlp_forward(...) in the hot path."""
    packed = pack_params(w1, b1, w2, b2)
    return mlp_forward(x, *packed, num_classes=w2.shape[1], **kwargs)


def init_params(key, input_size, hidden_size, num_classes, dtype=jnp.float32):
    """Deterministic parameter init matching PyTorch nn.Linear shapes
    (weights stored transposed: (in, out))."""
    k1, k2, k3, k4 = jax.random.split(key, 4)
    s1 = 1.0 / (input_size ** 0.5)
    s2 = 1.0 / (hidden_size ** 0.5)
    w1 = jax.random.uniform(k1, (input_size, hidden_size), dtype, -s1, s1)
    b1 = jax.random.uniform(k2, (hidden_size,), dtype, -s1, s1)
    w2 = jax.random.uniform(k3, (hidden_size, num_classes), dtype, -s2, s2)
    b2 = jax.random.uniform(k4, (num_classes,), dtype, -s2, s2)
    return w1, b1, w2, b2


if __name__ == "__main__":
    key = jax.random.PRNGKey(0)
    kx, kp = jax.random.split(key)

    batch = 8
    input_size = 32
    hidden_size = 64
    num_classes = 10

    x = jax.random.normal(kx, (batch, input_size), dtype=jnp.float32)
    w1, b1, w2, b2 = init_params(kp, input_size, hidden_size, num_classes)

    def reference(x, w1, b1, w2, b2):
        # Pure-JAX reference with the same bf16-input / f32-accumulation recipe.
        h = jnp.dot(x.astype(jnp.bfloat16), w1.astype(jnp.bfloat16),
                    preferred_element_type=jnp.float32) + b1
        h = jnp.maximum(h, 0.0)
        return jnp.dot(h.astype(jnp.bfloat16), w2.astype(jnp.bfloat16),
                       preferred_element_type=jnp.float32) + b2

    # --- main path: pack params once, weights-resident kernel -----------------
    packed = pack_params(w1, b1, w2, b2)
    out = mlp_forward(x, *packed, num_classes=num_classes)
    out = jax.block_until_ready(out)

    ref = reference(x, w1, b1, w2, b2)
    assert out.shape == (batch, num_classes)
    assert out.dtype == jnp.float32
    assert jnp.allclose(out, ref, atol=2e-2, rtol=2e-2)

    # Drop-in (per-call packing) convenience path gives identical results.
    out2 = jax.block_until_ready(neural_network_classifier(x, w1, b1, w2, b2))
    assert jnp.allclose(out2, out, atol=1e-6, rtol=1e-6)

    # --- exercise the hidden-dim-tiled fallback (used when weights > VMEM) ----
    hidden_big = 256
    w1b, b1b, w2b, b2b = init_params(kp, input_size, hidden_big, num_classes)
    out_ht = mlp_forward(x, *pack_params(w1b, b1b, w2b, b2b),
                         num_classes=num_classes,
                         force_hidden_tiling=True, block_h=128)
    out_ht = jax.block_until_ready(out_ht)
    ref_ht = reference(x, w1b, b1b, w2b, b2b)
    assert jnp.allclose(out_ht, ref_ht, atol=2e-2, rtol=2e-2)

    print("KERNEL_OK")
</pallas_src>

<mosaic_0001>
module attributes {stable_mosaic.version = 11 : i64} {
  func.func @_mlp_kernel(%arg0: i32, %arg1: memref<16x32xbf16, #tpu.memory_space<vmem>>, %arg2: memref<32x128xbf16, #tpu.memory_space<vmem>>, %arg3: memref<1x128xf32, #tpu.memory_space<vmem>>, %arg4: memref<128x128xbf16, #tpu.memory_space<vmem>>, %arg5: memref<1x128xf32, #tpu.memory_space<vmem>>, %arg6: memref<16x128xf32, #tpu.memory_space<vmem>>) attributes {dimension_semantics = [#tpu.dimension_semantics<parallel>], iteration_bounds = array<i64: 1>, scalar_prefetch = 0 : i64, scratch_operands = 0 : i64, tpu.core_type = #tpu.core_type<tc>, window_params = [{transform_indices = @transform_0, window_bounds = array<i64: 16, 32>}, {pipeline_mode = #tpu.pipeline_mode<synchronous>, transform_indices = @transform_1, window_bounds = array<i64: 32, 128>}, {pipeline_mode = #tpu.pipeline_mode<synchronous>, transform_indices = @transform_2, window_bounds = array<i64: 1, 128>}, {pipeline_mode = #tpu.pipeline_mode<synchronous>, transform_indices = @transform_3, window_bounds = array<i64: 128, 128>}, {pipeline_mode = #tpu.pipeline_mode<synchronous>, transform_indices = @transform_4, window_bounds = array<i64: 1, 128>}, {transform_indices = @transform_5, window_bounds = array<i64: 16, 128>}]} {
    %c0 = arith.constant 0 : index
    %c0_0 = arith.constant 0 : index
    %0 = vector.load %arg1[%c0, %c0_0] : memref<16x32xbf16, #tpu.memory_space<vmem>>, vector<16x32xbf16>
    %c0_1 = arith.constant 0 : index
    %c0_2 = arith.constant 0 : index
    %1 = vector.load %arg2[%c0_1, %c0_2] : memref<32x128xbf16, #tpu.memory_space<vmem>>, vector<32x128xbf16>
    %cst = arith.constant dense<0.000000e+00> : vector<16x128xf32>
    %2 = tpu.matmul %0, %1, %cst {dimension_numbers = #tpu.dot_dimension_numbers<[1], [0], [0], [1], [0, 0, 1, 1], [], []>} : vector<16x32xbf16>, vector<32x128xbf16>, vector<16x128xf32> -> vector<16x128xf32>
    %c0_3 = arith.constant 0 : index
    %c0_4 = arith.constant 0 : index
    %3 = vector.load %arg3[%c0_3, %c0_4] : memref<1x128xf32, #tpu.memory_space<vmem>>, vector<1x128xf32>
    %4 = vector.broadcast %3 : vector<1x128xf32> to vector<16x128xf32>
    %5 = arith.addf %2, %4 : vector<16x128xf32>
    %cst_5 = arith.constant 0.000000e+00 : f32
    %6 = vector.broadcast %cst_5 : f32 to vector<16x128xf32>
    %7 = arith.maximumf %5, %6 : vector<16x128xf32>
    %8 = arith.truncf %7 : vector<16x128xf32> to vector<16x128xbf16>
    %c0_6 = arith.constant 0 : index
    %c0_7 = arith.constant 0 : index
    %9 = vector.load %arg4[%c0_6, %c0_7] : memref<128x128xbf16, #tpu.memory_space<vmem>>, vector<128x128xbf16>
    %cst_8 = arith.constant dense<0.000000e+00> : vector<16x128xf32>
    %10 = tpu.matmul %8, %9, %cst_8 {dimension_numbers = #tpu.dot_dimension_numbers<[1], [0], [0], [1], [0, 0, 1, 1], [], []>} : vector<16x128xbf16>, vector<128x128xbf16>, vector<16x128xf32> -> vector<16x128xf32>
    %c0_9 = arith.constant 0 : index
    %c0_10 = arith.constant 0 : index
    %11 = vector.load %arg5[%c0_9, %c0_10] : memref<1x128xf32, #tpu.memory_space<vmem>>, vector<1x128xf32>
    %12 = vector.broadcast %11 : vector<1x128xf32> to vector<16x128xf32>
    %13 = arith.addf %10, %12 : vector<16x128xf32>
    %c0_11 = arith.constant 0 : index
    %c0_12 = arith.constant 0 : index
    %14 = vector.load %arg6[%c0_11, %c0_12] : memref<16x128xf32, #tpu.memory_space<vmem>>, vector<16x128xf32>
    tpu.vector_store %arg6[%c0_11, %c0_12], %13 {strides = array<i32>} : memref<16x128xf32, #tpu.memory_space<vmem>>, vector<16x128xf32>,
    return
  }
  func.func @transform_0(%arg0: i32) -> (i32, i32) {
    %c0_i32 = arith.constant 0 : i32
    %c0_i32_0 = arith.constant 0 : i32
    return %arg0, %c0_i32 : i32, i32
  }
  func.func @transform_1(%arg0: i32) -> (i32, i32) {
    %c0_i32 = arith.constant 0 : i32
    %c0_i32_0 = arith.constant 0 : i32
    %c0_i32_1 = arith.constant 0 : i32
    return %c0_i32, %c0_i32_0 : i32, i32
  }
  func.func @transform_2(%arg0: i32) -> (i32, i32) {
    %c0_i32 = arith.constant 0 : i32
    %c0_i32_0 = arith.constant 0 : i32
    %c0_i32_1 = arith.constant 0 : i32
    return %c0_i32, %c0_i32_0 : i32, i32
  }
  func.func @transform_3(%arg0: i32) -> (i32, i32) {
    %c0_i32 = arith.constant 0 : i32
    %c0_i32_0 = arith.constant 0 : i32
    %c0_i32_1 = arith.constant 0 : i32
    return %c0_i32, %c0_i32_0 : i32, i32
  }
  func.func @transform_4(%arg0: i32) -> (i32, i32) {
    %c0_i32 = arith.constant 0 : i32
    %c0_i32_0 = arith.constant 0 : i32
    %c0_i32_1 = arith.constant 0 : i32
    return %c0_i32, %c0_i32_0 : i32, i32
  }
  func.func @transform_5(%arg0: i32) -> (i32, i32) {
    %c0_i32 = arith.constant 0 : i32
    %c0_i32_0 = arith.constant 0 : i32
    return %arg0, %c0_i32 : i32, i32
  }
}

module attributes {stable_mosaic.version = 11 : i64} {
  func.func @_mlp_kernel(%arg0: i32, %arg1: memref<16x32xbf16, #tpu.memory_space<vmem>>, %arg2: memref<32x128xbf16, #tpu.memory_space<vmem>>, %arg3: memref<1x128xf32, #tpu.memory_space<vmem>>, %arg4: memref<128x128xbf16, #tpu.memory_space<vmem>>, %arg5: memref<1x128xf32, #tpu.memory_space<vmem>>, %arg6: memref<16x128xf32, #tpu.memory_space<vmem>>) attributes {dimension_semantics = [#tpu.dimension_semantics<parallel>], iteration_bounds = array<i64: 1>, scalar_prefetch = 0 : i64, scratch_operands = 0 : i64, tpu.core_type = #tpu.core_type<tc>, window_params = [{transform_indices = @transform_0, window_bounds = array<i64: 16, 32>}, {pipeline_mode = #tpu.pipeline_mode<synchronous>, transform_indices = @transform_1, window_bounds = array<i64: 32, 128>}, {pipeline_mode = #tpu.pipeline_mode<synchronous>, transform_indices = @transform_2, window_bounds = array<i64: 1, 128>}, {pipeline_mode = #tpu.pipeline_mode<synchronous>, transform_indices = @transform_3, window_bounds = array<i64: 128, 128>}, {pipeline_mode = #tpu.pipeline_mode<synchronous>, transform_indices = @transform_4, window_bounds = array<i64: 1, 128>}, {transform_indices = @transform_5, window_bounds = array<i64: 16, 128>}]} {
    %c0 = arith.constant 0 : index
    %c0_0 = arith.constant 0 : index
    %0 = vector.load %arg1[%c0, %c0_0] : memref<16x32xbf16, #tpu.memory_space<vmem>>, vector<16x32xbf16>
    %c0_1 = arith.constant 0 : index
    %c0_2 = arith.constant 0 : index
    %1 = vector.load %arg2[%c0_1, %c0_2] : memref<32x128xbf16, #tpu.memory_space<vmem>>, vector<32x128xbf16>
    %cst = arith.constant dense<0.000000e+00> : vector<16x128xf32>
    %2 = tpu.matmul %0, %1, %cst {dimension_numbers = #tpu.dot_dimension_numbers<[1], [0], [0], [1], [0, 0, 1, 1], [], []>} : vector<16x32xbf16>, vector<32x128xbf16>, vector<16x128xf32> -> vector<16x128xf32>
    %c0_3 = arith.constant 0 : index
    %c0_4 = arith.constant 0 : index
    %3 = vector.load %arg3[%c0_3, %c0_4] : memref<1x128xf32, #tpu.memory_space<vmem>>, vector<1x128xf32>
    %4 = vector.broadcast %3 : vector<1x128xf32> to vector<16x128xf32>
    %5 = arith.addf %2, %4 : vector<16x128xf32>
    %cst_5 = arith.constant 0.000000e+00 : f32
    %6 = vector.broadcast %cst_5 : f32 to vector<16x128xf32>
    %7 = arith.maximumf %5, %6 : vector<16x128xf32>
    %8 = arith.truncf %7 : vector<16x128xf32> to vector<16x128xbf16>
    %c0_6 = arith.constant 0 : index
    %c0_7 = arith.constant 0 : index
    %9 = vector.load %arg4[%c0_6, %c0_7] : memref<128x128xbf16, #tpu.memory_space<vmem>>, vector<128x128xbf16>
    %cst_8 = arith.constant dense<0.000000e+00> : vector<16x128xf32>
    %10 = tpu.matmul %8, %9, %cst_8 {dimension_numbers = #tpu.dot_dimension_numbers<[1], [0], [0], [1], [0, 0, 1, 1], [], []>} : vector<16x128xbf16>, vector<128x128xbf16>, vector<16x128xf32> -> vector<16x128xf32>
    %c0_9 = arith.constant 0 : index
    %c0_10 = arith.constant 0 : index
    %11 = vector.load %arg5[%c0_9, %c0_10] : memref<1x128xf32, #tpu.memory_space<vmem>>, vector<1x128xf32>
    %12 = vector.broadcast %11 : vector<1x128xf32> to vector<16x128xf32>
    %13 = arith.addf %10, %12 : vector<16x128xf32>
    %c0_11 = arith.constant 0 : index
    %c0_12 = arith.constant 0 : index
    %14 = vector.load %arg6[%c0_11, %c0_12] : memref<16x128xf32, #tpu.memory_space<vmem>>, vector<16x128xf32>
    tpu.vector_store %arg6[%c0_11, %c0_12], %13 {strides = array<i32>} : memref<16x128xf32, #tpu.memory_space<vmem>>, vector<16x128xf32>,
    return
  }
  func.func @transform_0(%arg0: i32) -> (i32, i32) {
    %c0_i32 = arith.constant 0 : i32
    %c0_i32_0 = arith.constant 0 : i32
    return %arg0, %c0_i32 : i32, i32
  }
  func.func @transform_1(%arg0: i32) -> (i32, i32) {
    %c0_i32 = arith.constant 0 : i32
    %c0_i32_0 = arith.constant 0 : i32
    %c0_i32_1 = arith.constant 0 : i32
    return %c0_i32, %c0_i32_0 : i32, i32
  }
  func.func @transform_2(%arg0: i32) -> (i32, i32) {
    %c0_i32 = arith.constant 0 : i32
    %c0_i32_0 = arith.constant 0 : i32
    %c0_i32_1 = arith.constant 0 : i32
    return %c0_i32, %c0_i32_0 : i32, i32
  }
  func.func @transform_3(%arg0: i32) -> (i32, i32) {
    %c0_i32 = arith.constant 0 : i32
    %c0_i32_0 = arith.constant 0 : i32
    %c0_i32_1 = arith.constant 0 : i32
    return %c0_i32, %c0_i32_0 : i32, i32
  }
  func.func @transform_4(%arg0: i32) -> (i32, i32) {
    %c0_i32 = arith.constant 0 : i32
    %c0_i32_0 = arith.constant 0 : i32
    %c0_i32_1 = arith.constant 0 : i32
    return %c0_i32, %c0_i32_0 : i32, i32
  }
  func.func @transform_5(%arg0: i32) -> (i32, i32) {
    %c0_i32 = arith.constant 0 : i32
    %c0_i32_0 = arith.constant 0 : i32
    return %arg0, %c0_i32 : i32, i32
  }
}

</mosaic_0001>

<llo_original>
// kernel: tpu_custom_call.1
$region0: #{tpu_custom_call.1}
  #allocation0 [shape = 'u32[]', space=smem, size = 0x4, offset = 0x4, fixed_abs, tag = 'smem constant byte address 0x4 - core index']
  #allocation1 [shape = 'u32[72,128]{1,0:T(1,128)}', space=vmem, size = 0x9000, scoped, tag = 'internal scratch']
  %s0 = inlined_call_operand.hbm [shape: bf16[16,32], index: 0, kind: input, shape index: {}]
  %s1 = inlined_call_operand.hbm [shape: bf16[32,128], index: 1, kind: input, shape index: {}]
  %s2 = inlined_call_operand.vmem [shape: f32[1,128], index: 2, kind: input, shape index: {}]
  %s3 = inlined_call_operand.hbm [shape: bf16[128,128], index: 3, kind: input, shape index: {}]
  %s4 = inlined_call_operand.vmem [shape: f32[1,128], index: 4, kind: input, shape index: {}]
  %s5 = inlined_call_operand.hbm [shape: f32[16,128], index: 5, kind: output, shape index: {}]
  %s6 = sld [smem:[#allocation0]]
  $region42: #{tpu_custom_call.1} parent=0
    _
  %s8 = ssub.s32 1, %s6
  %s9 = scalar_select 0, %s8, %s6
  $region1: #{tpu_custom_call.1} parent=0
    #allocation2 [shape = 'u8[4096]{0}', space=vmem, size = 0x1000, scoped, tag = 'input window, operand 0, single buffered']
    #allocation3 [shape = 's32[1]{0}', space=sflag, size = 0x4, scoped, tag = 'scoped memory for tpu_custom_call.1']
    #allocation4 [shape = 's32[1]{0}', space=sflag, size = 0x4, scoped, tag = 'scoped memory for tpu_custom_call.1']
    #allocation5 [shape = 'u8[8192]{0}', space=vmem, size = 0x2000, scoped, tag = 'input window, operand 1, single buffered']
    #allocation6 [shape = 's32[1]{0}', space=sflag, size = 0x4, scoped, tag = 'scoped memory for tpu_custom_call.1']
    #allocation7 [shape = 'u8[32768]{0}', space=vmem, size = 0x8000, scoped, tag = 'input window, operand 3, single buffered']
    #allocation8 [shape = 'u8[8192]{0}', space=vmem, size = 0x2000, scoped, tag = 'output window, operand 0, single buffered']
    %10 = vsyncpa [#allocation3], 0
    %11 = vsyncpa [#allocation6], 0
    %12 = vsyncpa [#allocation4], 0
    // Predicated region
    $region2: #{tpu_custom_call.1} parent=1 // pred_check
      _
    $region3: #{tpu_custom_call.1} parent=1 // pred_check_branch
      %14 = sbr.rel (0) target = $region5
    $region4: #{tpu_custom_call.1} parent=1 // pred_region
      %16 = vsyncadd [#allocation3], 0
      %s17 = sshll.u32 %s0, 4
      %s18 = int_to_ptr.hbm [resolvable:$true] %s17
      %s19 = sshll.u32 [#allocation2], 4
      %s20 = int_to_ptr.vmem [resolvable:$true] %s19
      %25 = dma.hbm_to_vmem [thread:$0]  %s18, 128, %s20, [#allocation3], 64, 64, 4
    $region5: #{tpu_custom_call.1} parent=1 // pred_fallthru
      _
    // Predicated region
    $region6: #{tpu_custom_call.1} parent=1 // pred_check
      _
    $region7: #{tpu_custom_call.1} parent=1 // pred_check_branch
      %27 = sbr.rel (0) target = $region9
    $region8: #{tpu_custom_call.1} parent=1 // pred_region
      %29 = vsyncadd [#allocation6], 0
      %s30 = sshll.u32 %s1, 4
      %s31 = int_to_ptr.hbm [resolvable:$true] %s30
      %s32 = sshll.u32 [#allocation5], 4
      %s33 = int_to_ptr.vmem [resolvable:$true] %s32
      %38 = dma.hbm_to_vmem [thread:$0]  %s31, 256, %s33, [#allocation6], 64, 64, 4
    $region9: #{tpu_custom_call.1} parent=1 // pred_fallthru
      _
    // Predicated region
    $region10: #{tpu_custom_call.1} parent=1 // pred_check
      _
    $region11: #{tpu_custom_call.1} parent=1 // pred_check_branch
      %40 = sbr.rel (0) target = $region13
    $region12: #{tpu_custom_call.1} parent=1 // pred_region
      _
    $region13: #{tpu_custom_call.1} parent=1 // pred_fallthru
      _
    // Predicated region
    $region14: #{tpu_custom_call.1} parent=1 // pred_check
      _
    $region15: #{tpu_custom_call.1} parent=1 // pred_check_branch
      %42 = sbr.rel (0) target = $region17
    $region16: #{tpu_custom_call.1} parent=1 // pred_region
      %44 = vsyncadd [#allocation6], 0
      %s45 = sshll.u32 %s3, 4
      %s46 = int_to_ptr.hbm [resolvable:$true] %s45
      %s47 = sshll.u32 [#allocation7], 4
      %s48 = int_to_ptr.vmem [resolvable:$true] %s47
      %53 = dma.hbm_to_vmem [thread:$0]  %s46, 1024, %s48, [#allocation6], 64, 64, 4
    $region17: #{tpu_custom_call.1} parent=1 // pred_fallthru
      _
    // Predicated region
    $region18: #{tpu_custom_call.1} parent=1 // pred_check
      _
    $region19: #{tpu_custom_call.1} parent=1 // pred_check_branch
      %55 = sbr.rel (0) target = $region21
    $region20: #{tpu_custom_call.1} parent=1 // pred_region
      _
    $region21: #{tpu_custom_call.1} parent=1 // pred_fallthru
      _
    // Predicated region
    $region22: #{tpu_custom_call.1} parent=1 // pred_check
      _
    $region23: #{tpu_custom_call.1} parent=1 // pred_check_branch
      %57 = sbr.rel (0) target = $region25
    $region24: #{tpu_custom_call.1} parent=1 // pred_region
      %59 = dma.done [#allocation3], 128
    $region25: #{tpu_custom_call.1} parent=1 // pred_fallthru
      _
    // Predicated region
    $region26: #{tpu_custom_call.1} parent=1 // pred_check
      _
    $region27: #{tpu_custom_call.1} parent=1 // pred_check_branch
      %61 = sbr.rel (0) target = $region29
    $region28: #{tpu_custom_call.1} parent=1 // pred_region
      %63 = dma.done [#allocation6], 256
    $region29: #{tpu_custom_call.1} parent=1 // pred_fallthru
      _
    // Predicated region
    $region30: #{tpu_custom_call.1} parent=1 // pred_check
      _
    $region31: #{tpu_custom_call.1} parent=1 // pred_check_branch
      %65 = sbr.rel (0) target = $region33
    $region32: #{tpu_custom_call.1} parent=1 // pred_region
      %67 = dma.done [#allocation6], 1024
    $region33: #{tpu_custom_call.1} parent=1 // pred_fallthru
      _
    %v69 = vld [vmem:[#allocation2] sm:$0xf]
    %v70 = vld [vmem:[#allocation2 + $0x4] sm:$0xf]
    %v71 = vld [vmem:[#allocation5] sm:$0xf]
    %v72 = vld [vmem:[#allocation5 + $0x4] sm:$0xf]
    %v73 = vld [vmem:[#allocation5 + $0x8] sm:$0xf]
    %v74 = vld [vmem:[#allocation5 + $0xc] sm:$0xf]
    %v75 = vld [vmem:[%s2] sm:$0x1]
    %v77 = vperm.slane %v75, 0
    %v81 = vunpack.c.l.b16 %v69
    %v82 = vunpack.c.l.b16 %v70
    %v83 = vpack.c.b16 %v82, %v81
    %v88 = vunpack.c.l.b16 %v71
    %v89 = vunpack.c.l.b16 %v72
    %v90 = vunpack.c.l.b16 %v73
    %v91 = vunpack.c.l.b16 %v74
    %v92 = vpack.c.b16 %v89, %v88
    %v93 = vpack.c.b16 %v91, %v90
    %vm96 = vcmask 261120
    %v98 = vsel %vm96, %v83, 0
    %100 = vmatpush.bf16.msra.mxu0 0
    %101 = vmatpush.bf16.msra.mxu0 0
    %102 = vmatpush.bf16.msra.mxu0 0
    %103 = vmatpush.bf16.msra.mxu0 0
    %104 = vmatpush.bf16.msra.mxu0 0
    %105 = vmatpush.bf16.msra.mxu0 0
    %106 = vmatpush.bf16.msra.mxu0 %v93
    %107 = vmatpush.bf16.msra.mxu0 %v92
    %108 = vmatmul.bf16.gmra.mxu0 %v98
    %v109 = vpop.f32.mrf.mxu0
    %v110 = vadd.f32 %v77, %v109
    %v111 = vpop.f32.mrf.mxu0
    %v112 = vadd.f32 %v77, %v111
    %113 = vdwg.mxu0
    %v114 = vmax.f32 %v110, 0.0
    %v115 = vmax.f32 %v112, 0.0
    %v116 = vpack.c.bf16 %v115, %v114
    %v117 = vld [vmem:[#allocation7] sm:$0xf]
    %v118 = vld [vmem:[#allocation7 + $0x4] sm:$0xf]
    %v119 = vld [vmem:[#allocation7 + $0x8] sm:$0xf]
    %v120 = vld [vmem:[#allocation7 + $0xc] sm:$0xf]
    %v121 = vld [vmem:[#allocation7 + $0x10] sm:$0xf]
    %v122 = vld [vmem:[#allocation7 + $0x14] sm:$0xf]
    %v123 = vld [vmem:[#allocation7 + $0x18] sm:$0xf]
    %v124 = vld [vmem:[#allocation7 + $0x1c] sm:$0xf]
    %v125 = vld [vmem:[#allocation7 + $0x20] sm:$0xf]
    %v126 = vld [vmem:[#allocation7 + $0x24] sm:$0xf]
    %v127 = vld [vmem:[#allocation7 + $0x28] sm:$0xf]
    %v128 = vld [vmem:[#allocation7 + $0x2c] sm:$0xf]
    %v129 = vld [vmem:[#allocation7 + $0x30] sm:$0xf]
    %v130 = vld [vmem:[#allocation7 + $0x34] sm:$0xf]
    %v131 = vld [vmem:[#allocation7 + $0x38] sm:$0xf]
    %v132 = vld [vmem:[#allocation7 + $0x3c] sm:$0xf]
    %v133 = vld [vmem:[%s4] sm:$0x1]
    %v135 = vperm.slane %v133, 0
    %v153 = vunpack.c.l.b16 %v117
    %v154 = vunpack.c.l.b16 %v118
    %v155 = vunpack.c.l.b16 %v119
    %v156 = vunpack.c.l.b16 %v120
    %v157 = vunpack.c.l.b16 %v121
    %v158 = vunpack.c.l.b16 %v122
    %v159 = vunpack.c.l.b16 %v123
    %v160 = vunpack.c.l.b16 %v124
    %v161 = vunpack.c.l.b16 %v125
    %v162 = vunpack.c.l.b16 %v126
    %v163 = vunpack.c.l.b16 %v127
    %v164 = vunpack.c.l.b16 %v128
    %v165 = vunpack.c.l.b16 %v129
    %v166 = vunpack.c.l.b16 %v130
    %v167 = vunpack.c.l.b16 %v131
    %v168 = vunpack.c.l.b16 %v132
    %v169 = vpack.c.b16 %v154, %v153
    %v170 = vpack.c.b16 %v156, %v155
    %v171 = vpack.c.b16 %v158, %v157
    %v172 = vpack.c.b16 %v160, %v159
    %v173 = vpack.c.b16 %v162, %v161
    %v174 = vpack.c.b16 %v164, %v163
    %v175 = vpack.c.b16 %v166, %v165
    %v176 = vpack.c.b16 %v168, %v167
    %185 = vmatpush.bf16.msra.mxu0 %v176
    %186 = vmatpush.bf16.msra.mxu0 %v175
    %187 = vmatpush.bf16.msra.mxu0 %v174
    %188 = vmatpush.bf16.msra.mxu0 %v173
    %189 = vmatpush.bf16.msra.mxu0 %v172
    %190 = vmatpush.bf16.msra.mxu0 %v171
    %191 = vmatpush.bf16.msra.mxu0 %v170
    %192 = vmatpush.bf16.msra.mxu0 %v169
    %193 = vmatmul.bf16.gmra.mxu0 %v116
    %v194 = vpop.f32.mrf.mxu0
    %v195 = vadd.f32 %v135, %v194
    %v196 = vpop.f32.mrf.mxu0
    %v197 = vadd.f32 %v135, %v196
    %198 = vdwg.mxu0
    %199 = vst [vmem:[#allocation8] sm:$0xff] %v195
    %200 = vst [vmem:[#allocation8 + $0x8] sm:$0xff] %v197
    // Predicated region
    $region34: #{tpu_custom_call.1} parent=1 // pred_check
      _
    $region35: #{tpu_custom_call.1} parent=1 // pred_check_branch
      %202 = sbr.rel (0) target = $region37
    $region36: #{tpu_custom_call.1} parent=1 // pred_region
      %204 = vsyncadd [#allocation4], 0
      %s205 = sshll.u32 [#allocation8], 4
      %s206 = int_to_ptr.vmem [resolvable:$true] %s205
      %s207 = sshll.u32 %s5, 4
      %s208 = int_to_ptr.hbm [resolvable:$true] %s207
      %213 = dma.vmem_to_hbm [thread:$0]  %s206, 256, %s208, [#allocation4], 128, 128, 8
    $region37: #{tpu_custom_call.1} parent=1 // pred_fallthru
      _
    // Predicated region
    $region38: #{tpu_custom_call.1} parent=1 // pred_check
      _
    $region39: #{tpu_custom_call.1} parent=1 // pred_check_branch
      %215 = sbr.rel (0) target = $region41
    $region40: #{tpu_custom_call.1} parent=1 // pred_region
      %217 = dma.done [#allocation4], 256
    $region41: #{tpu_custom_call.1} parent=1 // pred_fallthru
      _
    %218 = vsyncpa [#allocation3], 1
    %219 = vsyncpa [#allocation6], 1
    %220 = vsyncpa [#allocation4], 1

// kernel: tpu_custom_call.1
$region0: #{tpu_custom_call.1}
  #allocation0 [shape = 'u32[]', space=smem, size = 0x4, offset = 0x4, fixed_abs, tag = 'smem constant byte address 0x4 - core index']
  #allocation1 [shape = 'u32[72,128]{1,0:T(1,128)}', space=vmem, size = 0x9000, scoped, tag = 'internal scratch']
  %s0 = inlined_call_operand.hbm [shape: bf16[16,32], index: 0, kind: input, shape index: {}]
  %s1 = inlined_call_operand.hbm [shape: bf16[32,128], index: 1, kind: input, shape index: {}]
  %s2 = inlined_call_operand.vmem [shape: f32[1,128], index: 2, kind: input, shape index: {}]
  %s3 = inlined_call_operand.hbm [shape: bf16[128,128], index: 3, kind: input, shape index: {}]
  %s4 = inlined_call_operand.vmem [shape: f32[1,128], index: 4, kind: input, shape index: {}]
  %s5 = inlined_call_operand.hbm [shape: f32[16,128], index: 5, kind: output, shape index: {}]
  %s6 = sld [smem:[#allocation0]]
  $region42: #{tpu_custom_call.1} parent=0
    _
  %s8 = ssub.s32 1, %s6
  %s9 = scalar_select 0, %s8, %s6
  $region1: #{tpu_custom_call.1} parent=0
    #allocation2 [shape = 'u8[4096]{0}', space=vmem, size = 0x1000, scoped, tag = 'input window, operand 0, single buffered']
    #allocation3 [shape = 's32[1]{0}', space=sflag, size = 0x4, scoped, tag = 'scoped memory for tpu_custom_call.1']
    #allocation4 [shape = 's32[1]{0}', space=sflag, size = 0x4, scoped, tag = 'scoped memory for tpu_custom_call.1']
    #allocation5 [shape = 'u8[8192]{0}', space=vmem, size = 0x2000, scoped, tag = 'input window, operand 1, single buffered']
    #allocation6 [shape = 's32[1]{0}', space=sflag, size = 0x4, scoped, tag = 'scoped memory for tpu_custom_call.1']
    #allocation7 [shape = 'u8[32768]{0}', space=vmem, size = 0x8000, scoped, tag = 'input window, operand 3, single buffered']
    #allocation8 [shape = 'u8[8192]{0}', space=vmem, size = 0x2000, scoped, tag = 'output window, operand 0, single buffered']
    %10 = vsyncpa [#allocation3], 0
    %11 = vsyncpa [#allocation6], 0
    %12 = vsyncpa [#allocation4], 0
    // Predicated region
    $region2: #{tpu_custom_call.1} parent=1 // pred_check
      _
    $region3: #{tpu_custom_call.1} parent=1 // pred_check_branch
      %14 = sbr.rel (0) target = $region5
    $region4: #{tpu_custom_call.1} parent=1 // pred_region
      %16 = vsyncadd [#allocation3], 0
      %s17 = sshll.u32 %s0, 4
      %s18 = int_to_ptr.hbm [resolvable:$true] %s17
      %s19 = sshll.u32 [#allocation2], 4
      %s20 = int_to_ptr.vmem [resolvable:$true] %s19
      %25 = dma.hbm_to_vmem [thread:$0]  %s18, 128, %s20, [#allocation3], 64, 64, 4
    $region5: #{tpu_custom_call.1} parent=1 // pred_fallthru
      _
    // Predicated region
    $region6: #{tpu_custom_call.1} parent=1 // pred_check
      _
    $region7: #{tpu_custom_call.1} parent=1 // pred_check_branch
      %27 = sbr.rel (0) target = $region9
    $region8: #{tpu_custom_call.1} parent=1 // pred_region
      %29 = vsyncadd [#allocation6], 0
      %s30 = sshll.u32 %s1, 4
      %s31 = int_to_ptr.hbm [resolvable:$true] %s30
      %s32 = sshll.u32 [#allocation5], 4
      %s33 = int_to_ptr.vmem [resolvable:$true] %s32
      %38 = dma.hbm_to_vmem [thread:$0]  %s31, 256, %s33, [#allocation6], 64, 64, 4
    $region9: #{tpu_custom_call.1} parent=1 // pred_fallthru
      _
    // Predicated region
    $region10: #{tpu_custom_call.1} parent=1 // pred_check
      _
    $region11: #{tpu_custom_call.1} parent=1 // pred_check_branch
      %40 = sbr.rel (0) target = $region13
    $region12: #{tpu_custom_call.1} parent=1 // pred_region
      _
    $region13: #{tpu_custom_call.1} parent=1 // pred_fallthru
      _
    // Predicated region
    $region14: #{tpu_custom_call.1} parent=1 // pred_check
      _
    $region15: #{tpu_custom_call.1} parent=1 // pred_check_branch
      %42 = sbr.rel (0) target = $region17
    $region16: #{tpu_custom_call.1} parent=1 // pred_region
      %44 = vsyncadd [#allocation6], 0
      %s45 = sshll.u32 %s3, 4
      %s46 = int_to_ptr.hbm [resolvable:$true] %s45
      %s47 = sshll.u32 [#allocation7], 4
      %s48 = int_to_ptr.vmem [resolvable:$true] %s47
      %53 = dma.hbm_to_vmem [thread:$0]  %s46, 1024, %s48, [#allocation6], 64, 64, 4
    $region17: #{tpu_custom_call.1} parent=1 // pred_fallthru
      _
    // Predicated region
    $region18: #{tpu_custom_call.1} parent=1 // pred_check
      _
    $region19: #{tpu_custom_call.1} parent=1 // pred_check_branch
      %55 = sbr.rel (0) target = $region21
    $region20: #{tpu_custom_call.1} parent=1 // pred_region
      _
    $region21: #{tpu_custom_call.1} parent=1 // pred_fallthru
      _
    // Predicated region
    $region22: #{tpu_custom_call.1} parent=1 // pred_check
      _
    $region23: #{tpu_custom_call.1} parent=1 // pred_check_branch
      %57 = sbr.rel (0) target = $region25
    $region24: #{tpu_custom_call.1} parent=1 // pred_region
      %59 = dma.done [#allocation3], 128
    $region25: #{tpu_custom_call.1} parent=1 // pred_fallthru
      _
    // Predicated region
    $region26: #{tpu_custom_call.1} parent=1 // pred_check
      _
    $region27: #{tpu_custom_call.1} parent=1 // pred_check_branch
      %61 = sbr.rel (0) target = $region29
    $region28: #{tpu_custom_call.1} parent=1 // pred_region
      %63 = dma.done [#allocation6], 256
    $region29: #{tpu_custom_call.1} parent=1 // pred_fallthru
      _
    // Predicated region
    $region30: #{tpu_custom_call.1} parent=1 // pred_check
      _
    $region31: #{tpu_custom_call.1} parent=1 // pred_check_branch
      %65 = sbr.rel (0) target = $region33
    $region32: #{tpu_custom_call.1} parent=1 // pred_region
      %67 = dma.done [#allocation6], 1024
    $region33: #{tpu_custom_call.1} parent=1 // pred_fallthru
      _
    %v69 = vld [vmem:[#allocation2] sm:$0xf]
    %v70 = vld [vmem:[#allocation2 + $0x4] sm:$0xf]
    %v71 = vld [vmem:[#allocation5] sm:$0xf]
    %v72 = vld [vmem:[#allocation5 + $0x4] sm:$0xf]
    %v73 = vld [vmem:[#allocation5 + $0x8] sm:$0xf]
    %v74 = vld [vmem:[#allocation5 + $0xc] sm:$0xf]
    %v75 = vld [vmem:[%s2] sm:$0x1]
    %v77 = vperm.slane %v75, 0
    %v81 = vunpack.c.l.b16 %v69
    %v82 = vunpack.c.l.b16 %v70
    %v83 = vpack.c.b16 %v82, %v81
    %v88 = vunpack.c.l.b16 %v71
    %v89 = vunpack.c.l.b16 %v72
    %v90 = vunpack.c.l.b16 %v73
    %v91 = vunpack.c.l.b16 %v74
    %v92 = vpack.c.b16 %v89, %v88
    %v93 = vpack.c.b16 %v91, %v90
    %vm96 = vcmask 261120
    %v98 = vsel %vm96, %v83, 0
    %100 = vmatpush.bf16.msra.mxu0 0
    %101 = vmatpush.bf16.msra.mxu0 0
    %102 = vmatpush.bf16.msra.mxu0 0
    %103 = vmatpush.bf16.msra.mxu0 0
    %104 = vmatpush.bf16.msra.mxu0 0
    %105 = vmatpush.bf16.msra.mxu0 0
    %106 = vmatpush.bf16.msra.mxu0 %v93
    %107 = vmatpush.bf16.msra.mxu0 %v92
    %108 = vmatmul.bf16.gmra.mxu0 %v98
    %v109 = vpop.f32.mrf.mxu0
    %v110 = vadd.f32 %v77, %v109
    %v111 = vpop.f32.mrf.mxu0
    %v112 = vadd.f32 %v77, %v111
    %113 = vdwg.mxu0
    %v114 = vmax.f32 %v110, 0.0
    %v115 = vmax.f32 %v112, 0.0
    %v116 = vpack.c.bf16 %v115, %v114
    %v117 = vld [vmem:[#allocation7] sm:$0xf]
    %v118 = vld [vmem:[#allocation7 + $0x4] sm:$0xf]
    %v119 = vld [vmem:[#allocation7 + $0x8] sm:$0xf]
    %v120 = vld [vmem:[#allocation7 + $0xc] sm:$0xf]
    %v121 = vld [vmem:[#allocation7 + $0x10] sm:$0xf]
    %v122 = vld [vmem:[#allocation7 + $0x14] sm:$0xf]
    %v123 = vld [vmem:[#allocation7 + $0x18] sm:$0xf]
    %v124 = vld [vmem:[#allocation7 + $0x1c] sm:$0xf]
    %v125 = vld [vmem:[#allocation7 + $0x20] sm:$0xf]
    %v126 = vld [vmem:[#allocation7 + $0x24] sm:$0xf]
    %v127 = vld [vmem:[#allocation7 + $0x28] sm:$0xf]
    %v128 = vld [vmem:[#allocation7 + $0x2c] sm:$0xf]
    %v129 = vld [vmem:[#allocation7 + $0x30] sm:$0xf]
    %v130 = vld [vmem:[#allocation7 + $0x34] sm:$0xf]
    %v131 = vld [vmem:[#allocation7 + $0x38] sm:$0xf]
    %v132 = vld [vmem:[#allocation7 + $0x3c] sm:$0xf]
    %v133 = vld [vmem:[%s4] sm:$0x1]
    %v135 = vperm.slane %v133, 0
    %v153 = vunpack.c.l.b16 %v117
    %v154 = vunpack.c.l.b16 %v118
    %v155 = vunpack.c.l.b16 %v119
    %v156 = vunpack.c.l.b16 %v120
    %v157 = vunpack.c.l.b16 %v121
    %v158 = vunpack.c.l.b16 %v122
    %v159 = vunpack.c.l.b16 %v123
    %v160 = vunpack.c.l.b16 %v124
    %v161 = vunpack.c.l.b16 %v125
    %v162 = vunpack.c.l.b16 %v126
    %v163 = vunpack.c.l.b16 %v127
    %v164 = vunpack.c.l.b16 %v128
    %v165 = vunpack.c.l.b16 %v129
    %v166 = vunpack.c.l.b16 %v130
    %v167 = vunpack.c.l.b16 %v131
    %v168 = vunpack.c.l.b16 %v132
    %v169 = vpack.c.b16 %v154, %v153
    %v170 = vpack.c.b16 %v156, %v155
    %v171 = vpack.c.b16 %v158, %v157
    %v172 = vpack.c.b16 %v160, %v159
    %v173 = vpack.c.b16 %v162, %v161
    %v174 = vpack.c.b16 %v164, %v163
    %v175 = vpack.c.b16 %v166, %v165
    %v176 = vpack.c.b16 %v168, %v167
    %185 = vmatpush.bf16.msra.mxu0 %v176
    %186 = vmatpush.bf16.msra.mxu0 %v175
    %187 = vmatpush.bf16.msra.mxu0 %v174
    %188 = vmatpush.bf16.msra.mxu0 %v173
    %189 = vmatpush.bf16.msra.mxu0 %v172
    %190 = vmatpush.bf16.msra.mxu0 %v171
    %191 = vmatpush.bf16.msra.mxu0 %v170
    %192 = vmatpush.bf16.msra.mxu0 %v169
    %193 = vmatmul.bf16.gmra.mxu0 %v116
    %v194 = vpop.f32.mrf.mxu0
    %v195 = vadd.f32 %v135, %v194
    %v196 = vpop.f32.mrf.mxu0
    %v197 = vadd.f32 %v135, %v196
    %198 = vdwg.mxu0
    %199 = vst [vmem:[#allocation8] sm:$0xff] %v195
    %200 = vst [vmem:[#allocation8 + $0x8] sm:$0xff] %v197
    // Predicated region
    $region34: #{tpu_custom_call.1} parent=1 // pred_check
      _
    $region35: #{tpu_custom_call.1} parent=1 // pred_check_branch
      %202 = sbr.rel (0) target = $region37
    $region36: #{tpu_custom_call.1} parent=1 // pred_region
      %204 = vsyncadd [#allocation4], 0
      %s205 = sshll.u32 [#allocation8], 4
      %s206 = int_to_ptr.vmem [resolvable:$true] %s205
      %s207 = sshll.u32 %s5, 4
      %s208 = int_to_ptr.hbm [resolvable:$true] %s207
      %213 = dma.vmem_to_hbm [thread:$0]  %s206, 256, %s208, [#allocation4], 128, 128, 8
    $region37: #{tpu_custom_call.1} parent=1 // pred_fallthru
      _
    // Predicated region
    $region38: #{tpu_custom_call.1} parent=1 // pred_check
      _
    $region39: #{tpu_custom_call.1} parent=1 // pred_check_branch
      %215 = sbr.rel (0) target = $region41
    $region40: #{tpu_custom_call.1} parent=1 // pred_region
      %217 = dma.done [#allocation4], 256
    $region41: #{tpu_custom_call.1} parent=1 // pred_fallthru
      _
    %218 = vsyncpa [#allocation3], 1
    %219 = vsyncpa [#allocation6], 1
    %220 = vsyncpa [#allocation4], 1

</llo_original>
